<compile_context>
chip_gen: v6e
topology: v6e:2x2x1
jax: 0.10.0
libtpu: 0.0.40
codegen_flags: <defaults>
</compile_context>

<pallas_src>
import functools
import math

import jax
import jax.numpy as jnp
from jax.experimental import pallas as pl
from jax.experimental.pallas import tpu as pltpu


# ------------------------------------------------------------------
# PE buffer construction (deterministic, mirrors the PyTorch __init__)
# ------------------------------------------------------------------
def make_positional_encoding(max_len: int, d_model: int, dtype=jnp.float32):
    position = jnp.arange(max_len, dtype=jnp.float32)[:, None]            # (max_len, 1)
    div_term = jnp.exp(
        jnp.arange(0, d_model, 2, dtype=jnp.float32) * (-math.log(10000.0) / d_model)
    )                                                                      # (d_model//2,)
    angles = position * div_term                                           # (max_len, d_model//2)
    pe = jnp.zeros((max_len, d_model), dtype=jnp.float32)
    pe = pe.at[:, 0::2].set(jnp.sin(angles))
    pe = pe.at[:, 1::2].set(jnp.cos(angles))
    return pe.astype(dtype)                                                # (max_len, d_model)


# ------------------------------------------------------------------
# Pallas kernels
# ------------------------------------------------------------------
def add_pe_kernel(x_ref, pe_ref, o_ref):
    # x_ref: (bb, TR, 128) tile; pe_ref: (TR, 128) tile shared across the batch
    # block (already in x's dtype).  Plain broadcasting add -> single vadd/vreg.
    o_ref[...] = x_ref[...] + pe_ref[...]


def add_pe_dropout_kernel(x_ref, pe_ref, mask_ref, o_ref, *, scale: float):
    # Training-mode path: inverted dropout applied after the PE add.
    # mask_ref is an int8 keep-mask (1 = keep) generated in the wrapper.
    y = x_ref[...] + pe_ref[...]
    keep = mask_ref[...] != 0
    s = jnp.asarray(scale, dtype=y.dtype)                 # stay in input dtype
    o_ref[...] = jnp.where(keep, y * s, jnp.zeros_like(y))


# ------------------------------------------------------------------
# Wrapper
# ------------------------------------------------------------------
def positional_encoding(x, pe, *, dropout_p: float = 0.1, training: bool = False,
                        seed: int = 0, block_rows: int | None = None,
                        target_bytes: int = 4 * 1024 * 1024):
    """x: (B, S, D); pe: (max_len, D). Returns (B, S, D)."""
    B, S, D = x.shape
    # Cast PE to x.dtype once (no per-tile convert in the kernel).
    # NOTE: PyTorch adds an fp32 buffer; for bf16 x this loses a little PE precision.
    pe_s = pe[:S].astype(x.dtype)

    # Lane-dense layout: flatten (S, D) row-major and zero-pad up to a multiple
    # of 128, so the output store is always an unmasked, lane-dense vst.
    cols = 128
    L = S * D
    rows = pl.cdiv(L, cols)
    Lp = rows * cols
    pad = Lp - L

    x_flat = x.reshape(B, L)
    pe_flat = pe_s.reshape(L)
    if pad:
        x_flat = jnp.pad(x_flat, ((0, 0), (0, pad)))
        pe_flat = jnp.pad(pe_flat, (0, pad))
    x2 = x_flat.reshape(B, rows, cols)
    pe2 = pe_flat.reshape(rows, cols)

    # Row-tile size: multiple of the sublane packing (8 f32 / 16 bf16 / 32 int8),
    # targeting ~4 MiB per x tile (per-step overhead amortization; still well
    # under the 48 MiB VMEM limit with everything double-buffered).
    itemsize = jnp.dtype(x.dtype).itemsize
    sub = max(8, 32 // itemsize)
    if block_rows is not None:
        tr = max(sub, (int(block_rows) // sub) * sub)
    else:
        tr = max(sub, (target_bytes // (cols * itemsize)) // sub * sub)
    if tr >= rows:
        tr = rows
    n_row_tiles = pl.cdiv(rows, tr)

    # If the whole per-batch slab fits in one tile, aggregate batch elements per
    # block so small shapes still issue large DMAs instead of per-batch steps.
    if tr == rows:
        slab_bytes = rows * cols * itemsize
        bb = int(min(B, max(1, target_bytes // max(slab_bytes, 1))))
    else:
        bb = 1
    n_batch_tiles = pl.cdiv(B, bb)

    # Row-tile axis outermost, batch innermost: the PE block index is constant
    # across the inner batch axis, so the PE tile stays resident in VMEM.
    grid = (n_row_tiles, n_batch_tiles)
    out_shape = jax.ShapeDtypeStruct((B, rows, cols), x.dtype)
    cparams = pltpu.CompilerParams(
        dimension_semantics=("parallel", "parallel"),
        vmem_limit_bytes=48 * 1024 * 1024,
    )

    x_spec = pl.BlockSpec((bb, tr, cols), lambda s, b: (b, s, 0))
    pe_spec = pl.BlockSpec((tr, cols), lambda s, b: (s, 0))
    o_spec = pl.BlockSpec((bb, tr, cols), lambda s, b: (b, s, 0))

    if (not training) or dropout_p == 0.0:
        # Eval mode: dropout is identity (PyTorch nn.Dropout in eval).
        out = pl.pallas_call(
            add_pe_kernel,
            out_shape=out_shape,
            grid_spec=pltpu.PrefetchScalarGridSpec(
                num_scalar_prefetch=0,
                grid=grid,
                in_specs=[x_spec, pe_spec],
                out_specs=o_spec,
            ),
            compiler_params=cparams,
        )(x2, pe2)
    else:
        # Training mode: Bernoulli(1-p) keep mask with 1/(1-p) rescale.
        # TODO(synk): RNG stream differs from torch's dropout mask (semantics
        # match, exact mask values do not).
        key = jax.random.PRNGKey(seed)
        keep_mask = jax.random.bernoulli(
            key, 1.0 - float(dropout_p), (B, rows, cols)).astype(jnp.int8)
        mask_spec = pl.BlockSpec((bb, tr, cols), lambda s, b: (b, s, 0))
        out = pl.pallas_call(
            functools.partial(add_pe_dropout_kernel,
                              scale=1.0 / (1.0 - float(dropout_p))),
            out_shape=out_shape,
            grid_spec=pltpu.PrefetchScalarGridSpec(
                num_scalar_prefetch=0,
                grid=grid,
                in_specs=[x_spec, pe_spec, mask_spec],
                out_specs=o_spec,
            ),
            compiler_params=cparams,
        )(x2, pe2, keep_mask)

    out = out.reshape(B, Lp)
    if pad:
        out = out[:, :L]
    return out.reshape(B, S, D)


# ------------------------------------------------------------------
# Demo / self-check
# ------------------------------------------------------------------
if __name__ == "__main__":
    B, S, D = 2, 8, 32
    MAX_LEN = 64  # small max_len for the synthetic buffer (module default 5000)

    key = jax.random.PRNGKey(0)
    x = jax.random.normal(key, (B, S, D), dtype=jnp.float32)
    pe = make_positional_encoding(MAX_LEN, D, dtype=jnp.float32)

    # --- Eval-mode forward (dropout == identity), batch-aggregated slab path ---
    out = jax.block_until_ready(positional_encoding(x, pe, dropout_p=0.1, training=False))
    ref = x + pe[None, :S, :]
    assert out.shape == (B, S, D)
    assert jnp.allclose(out, ref, atol=1e-6, rtol=1e-6), "eval mismatch vs reference"

    # --- Eval-mode forward exercising the row-tiled path (partial last tile) ---
    S2, D2 = 12, 128            # rows=12, forced block_rows=8 -> tiles of 8 and 4
    x_t = jax.random.normal(jax.random.PRNGKey(1), (B, S2, D2), dtype=jnp.float32)
    pe_t = make_positional_encoding(MAX_LEN, D2, dtype=jnp.float32)
    out_t = jax.block_until_ready(
        positional_encoding(x_t, pe_t, training=False, block_rows=8))
    ref_t = x_t + pe_t[None, :S2, :]
    assert jnp.allclose(out_t, ref_t, atol=1e-6, rtol=1e-6), "tiled eval mismatch"

    # --- Eval-mode forward exercising the lane-padding path (S*D % 128 != 0) ---
    S3, D3 = 7, 20              # L=140 -> padded to 256 (rows=2, pad=116)
    x_p = jax.random.normal(jax.random.PRNGKey(2), (B, S3, D3), dtype=jnp.float32)
    pe_p = make_positional_encoding(MAX_LEN, D3, dtype=jnp.float32)
    out_p = jax.block_until_ready(positional_encoding(x_p, pe_p, training=False))
    ref_p = x_p + pe_p[None, :S3, :]
    assert jnp.allclose(out_p, ref_p, atol=1e-6, rtol=1e-6), "padded eval mismatch"

    # --- Training-mode forward: every element is either 0 or (x+pe)/(1-p) ---
    p = 0.5
    out_d = jax.block_until_ready(
        positional_encoding(x, pe, dropout_p=p, training=True, seed=123))
    scaled = ref / (1.0 - p)
    is_zero = jnp.isclose(out_d, 0.0, atol=1e-6)
    is_kept = jnp.isclose(out_d, scaled, atol=1e-5, rtol=1e-5)
    assert out_d.shape == (B, S, D)
    assert bool(jnp.all(is_zero | is_kept)), "dropout output not in {0, scaled}"

    print("KERNEL_OK")
</pallas_src>

<mosaic_0001>
module attributes {stable_mosaic.version = 11 : i64} {
  func.func @add_pe_kernel(%arg0: i32, %arg1: i32, %arg2: memref<2x2x128xf32, #tpu.memory_space<vmem>>, %arg3: memref<2x128xf32, #tpu.memory_space<vmem>>, %arg4: memref<2x2x128xf32, #tpu.memory_space<vmem>>) attributes {dimension_semantics = [#tpu.dimension_semantics<parallel>, #tpu.dimension_semantics<parallel>], iteration_bounds = array<i64: 1, 1>, scalar_prefetch = 0 : i64, scratch_operands = 0 : i64, tpu.core_type = #tpu.core_type<tc>, window_params = [{transform_indices = @transform_0, window_bounds = array<i64: 2, 2, 128>}, {transform_indices = @transform_1, window_bounds = array<i64: 2, 128>}, {transform_indices = @transform_2, window_bounds = array<i64: 2, 2, 128>}]} {
    %c0 = arith.constant 0 : index
    %c0_0 = arith.constant 0 : index
    %c0_1 = arith.constant 0 : index
    %0 = vector.load %arg2[%c0, %c0_0, %c0_1] : memref<2x2x128xf32, #tpu.memory_space<vmem>>, vector<2x2x128xf32>
    %c0_2 = arith.constant 0 : index
    %c0_3 = arith.constant 0 : index
    %1 = vector.load %arg3[%c0_2, %c0_3] : memref<2x128xf32, #tpu.memory_space<vmem>>, vector<2x128xf32>
    %2 = vector.shape_cast %1 : vector<2x128xf32> to vector<1x2x128xf32>
    %3 = vector.broadcast %2 : vector<1x2x128xf32> to vector<2x2x128xf32>
    %4 = arith.addf %0, %3 : vector<2x2x128xf32>
    %c0_4 = arith.constant 0 : index
    %c0_5 = arith.constant 0 : index
    %c0_6 = arith.constant 0 : index
    %5 = vector.load %arg4[%c0_4, %c0_5, %c0_6] : memref<2x2x128xf32, #tpu.memory_space<vmem>>, vector<2x2x128xf32>
    tpu.vector_store %arg4[%c0_4, %c0_5, %c0_6], %4 {strides = array<i32>} : memref<2x2x128xf32, #tpu.memory_space<vmem>>, vector<2x2x128xf32>,
    return
  }
  func.func @transform_0(%arg0: i32, %arg1: i32) -> (i32, i32, i32) {
    %c0_i32 = arith.constant 0 : i32
    %c0_i32_0 = arith.constant 0 : i32
    return %arg1, %arg0, %c0_i32 : i32, i32, i32
  }
  func.func @transform_1(%arg0: i32, %arg1: i32) -> (i32, i32) {
    %c0_i32 = arith.constant 0 : i32
    %c0_i32_0 = arith.constant 0 : i32
    return %arg0, %c0_i32 : i32, i32
  }
  func.func @transform_2(%arg0: i32, %arg1: i32) -> (i32, i32, i32) {
    %c0_i32 = arith.constant 0 : i32
    %c0_i32_0 = arith.constant 0 : i32
    return %arg1, %arg0, %c0_i32 : i32, i32, i32
  }
}

</mosaic_0001>

<llo_original>
// kernel: tpu_custom_call.1
$region0: #{tpu_custom_call.1}
  #allocation0 [shape = 'u32[]', space=smem, size = 0x4, offset = 0x4, fixed_abs, tag = 'smem constant byte address 0x4 - core index']
  #allocation1 [shape = 'u32[144,128]{1,0:T(1,128)}', space=vmem, size = 0x12000, scoped, tag = 'internal scratch']
  %s0 = inlined_call_operand.hbm [shape: f32[2,2,128], index: 0, kind: input, shape index: {}]
  %s1 = inlined_call_operand.hbm [shape: f32[2,128], index: 1, kind: input, shape index: {}]
  %s2 = inlined_call_operand.hbm [shape: f32[2,2,128], index: 2, kind: output, shape index: {}]
  %s3 = sld [smem:[#allocation0]]
  $region26: #{tpu_custom_call.1} parent=0
    _
  %s5 = ssub.s32 1, %s3
  %s6 = scalar_select 0, %s5, %s3
  $region1: #{tpu_custom_call.1} parent=0
    #allocation2 [shape = 'u8[2048]{0}', space=vmem, size = 0x800, scoped, tag = 'input window, operand 0, single buffered']
    #allocation3 [shape = 's32[1]{0}', space=sflag, size = 0x4, scoped, tag = 'scoped memory for tpu_custom_call.1']
    #allocation4 [shape = 's32[1]{0}', space=sflag, size = 0x4, scoped, tag = 'scoped memory for tpu_custom_call.1']
    #allocation5 [shape = 'u8[1024]{0}', space=vmem, size = 0x400, scoped, tag = 'input window, operand 1, single buffered']
    #allocation6 [shape = 's32[1]{0}', space=sflag, size = 0x4, scoped, tag = 'scoped memory for tpu_custom_call.1']
    #allocation7 [shape = 'u8[2048]{0}', space=vmem, size = 0x800, scoped, tag = 'output window, operand 0, single buffered']
    %7 = vsyncpa [#allocation3], 0
    %8 = vsyncpa [#allocation6], 0
    %9 = vsyncpa [#allocation4], 0
    // Predicated region
    $region2: #{tpu_custom_call.1} parent=1 // pred_check
      _
    $region3: #{tpu_custom_call.1} parent=1 // pred_check_branch
      %11 = sbr.rel (0) target = $region5
    $region4: #{tpu_custom_call.1} parent=1 // pred_region
      %s13 = ssub.s32 64, 64
      %14 = vsyncadd [#allocation3], %s13
      %s15 = sshll.u32 [#allocation2], 4
      %s16 = int_to_ptr.vmem [resolvable:$true] %s15
      %21 = dma.hbm_to_vmem [thread:$0]  %s0, 64, %s16, [#allocation3], 32, 32, 2
    $region5: #{tpu_custom_call.1} parent=1 // pred_fallthru
      _
    // Predicated region
    $region6: #{tpu_custom_call.1} parent=1 // pred_check
      _
    $region7: #{tpu_custom_call.1} parent=1 // pred_check_branch
      %23 = sbr.rel (0) target = $region9
    $region8: #{tpu_custom_call.1} parent=1 // pred_region
      %s25 = ssub.s32 32, 32
      %26 = vsyncadd [#allocation6], %s25
      %s28 = sshll.u32 [#allocation5], 4
      %s29 = int_to_ptr.vmem [resolvable:$true] %s28
      %31 = dma.hbm_to_vmem [thread:$0]  %s1, 32, %s29, [#allocation6]
    $region9: #{tpu_custom_call.1} parent=1 // pred_fallthru
      _
    // Predicated region
    $region10: #{tpu_custom_call.1} parent=1 // pred_check
      _
    $region11: #{tpu_custom_call.1} parent=1 // pred_check_branch
      %33 = sbr.rel (0) target = $region13
    $region12: #{tpu_custom_call.1} parent=1 // pred_region
      %34 = dma.done [#allocation3], 64
    $region13: #{tpu_custom_call.1} parent=1 // pred_fallthru
      _
    // Predicated region
    $region14: #{tpu_custom_call.1} parent=1 // pred_check
      _
    $region15: #{tpu_custom_call.1} parent=1 // pred_check_branch
      %36 = sbr.rel (0) target = $region17
    $region16: #{tpu_custom_call.1} parent=1 // pred_region
      %37 = dma.done [#allocation6], 32
    $region17: #{tpu_custom_call.1} parent=1 // pred_fallthru
      _
    %v38 = vld [vmem:[#allocation2] sm:$0x3]
    %v39 = vld [vmem:[#allocation2 + $0x2] sm:$0x3]
    %v40 = vld [vmem:[#allocation5] sm:$0x3]
    %v41 = vadd.f32 %v38, %v40
    %v42 = vadd.f32 %v39, %v40
    %43 = vst [vmem:[#allocation7] sm:$0x3] %v41
    %44 = vst [vmem:[#allocation7 + $0x2] sm:$0x3] %v42
    // Predicated region
    $region18: #{tpu_custom_call.1} parent=1 // pred_check
      _
    $region19: #{tpu_custom_call.1} parent=1 // pred_check_branch
      %46 = sbr.rel (0) target = $region21
    $region20: #{tpu_custom_call.1} parent=1 // pred_region
      %s48 = ssub.s32 64, 64
      %49 = vsyncadd [#allocation4], %s48
      %s50 = sshll.u32 [#allocation7], 4
      %s51 = int_to_ptr.vmem [resolvable:$true] %s50
      %56 = dma.vmem_to_hbm [thread:$0]  %s51, 64, %s2, [#allocation4], 32, 32, 2
    $region21: #{tpu_custom_call.1} parent=1 // pred_fallthru
      _
    // Predicated region
    $region22: #{tpu_custom_call.1} parent=1 // pred_check
      _
    $region23: #{tpu_custom_call.1} parent=1 // pred_check_branch
      %58 = sbr.rel (0) target = $region25
    $region24: #{tpu_custom_call.1} parent=1 // pred_region
      %59 = dma.done [#allocation4], 64
    $region25: #{tpu_custom_call.1} parent=1 // pred_fallthru
      _
    %60 = vsyncpa [#allocation3], 1
    %61 = vsyncpa [#allocation6], 1
    %62 = vsyncpa [#allocation4], 1

</llo_original>
